<compile_context>
chip_gen: v5e
topology: v5e:2x2
jax: 0.10.0
libtpu: 0.0.40
codegen_flags: <defaults>
</compile_context>

<pallas_src>
import functools

import jax
import jax.numpy as jnp
from jax import lax
from jax.experimental import pallas as pl
from jax.experimental.pallas import tpu as pltpu

LANES = 128
ACC_ROWS = 8          # one f32 vreg (8, 128): the per-partial accumulator block
CHUNK_ROWS = 512      # in-kernel compute strip: 512*128*4 B = 256 KiB per temporary


def _tpu_config():
    """Returns (max_tile_rows, num_partials, use_core_parallel, vmem_limit_bytes)."""
    try:
        kind = jax.devices()[0].device_kind.lower()
    except Exception:
        kind = ""
    if "v7" in kind:      # 2 TensorCores/chip, 64 MiB VMEM/TC, ~3.2 TB/s HBM
        return 8192, 2, True, 48 * 1024 * 1024
    if "v6" in kind:      # 1 TC, 128 MiB physical VMEM
        return 8192, 1, False, 64 * 1024 * 1024
    if "v5" in kind:      # 1 TC, 128 MiB physical VMEM, lower HBM BW
        return 4096, 1, False, 64 * 1024 * 1024
    return 2048, 1, False, None


def _focal_elementwise(p, t, alpha, gamma, binary_targets):
    """Per-element focal loss, matching the PyTorch module's math."""
    p = p.astype(jnp.float32)
    t = t.astype(jnp.float32)
    p_t = p * t + (1.0 - p) * (1.0 - t)
    if binary_targets:
        # For t exactly in {0, 1}: BCE collapses to -clamp(log(p_t), -100)
        # (one EUP log per element instead of two).
        bce = -jnp.maximum(jnp.log(p_t), -100.0)
    else:
        # General path: PyTorch-style per-term clamping (correct for soft labels).
        log_p = jnp.maximum(jnp.log(p), -100.0)
        log_1mp = jnp.maximum(jnp.log(1.0 - p), -100.0)
        bce = -(t * log_p + (1.0 - t) * log_1mp)
    alpha_factor = t * alpha + (1.0 - t) * (1.0 - alpha)
    m = 1.0 - p_t
    if float(gamma) == int(gamma) and 0 <= int(gamma) <= 8:
        g = int(gamma)                       # integer gamma: VPU multiplies, no pow
        mod = jnp.ones_like(m) if g == 0 else m
        for _ in range(g - 1):
            mod = mod * m
    else:
        mod = m ** gamma                     # fractional gamma: EUP exp/log fallback
    return alpha_factor * mod * bce


def _focal_loss_kernel(p_ref, t_ref, out_ref, *, alpha, gamma, binary_targets,
                       rows_valid, tile_rows, tiles_per_partial,
                       num_full_blocks, any_masked):
    c = pl.program_id(0)
    i = pl.program_id(1)

    @pl.when(i == 0)
    def _():
        out_ref[...] = jnp.zeros_like(out_ref)

    block_id = c * tiles_per_partial + i
    base_row = block_id * tile_rows

    def do_chunk(off, cr, masked):
        p = p_ref[pl.ds(off, cr), :]
        t = t_ref[pl.ds(off, cr), :]
        if masked:
            # Row-granular mask: (cr, 1) sublane compare, broadcast by the select.
            rid = base_row + off + lax.broadcasted_iota(jnp.int32, (cr, 1), 0)
            valid = rid < rows_valid
            # (p, t) = (1, 1) on invalid rows -> exactly zero focal loss.
            p = jnp.where(valid, p.astype(jnp.float32), 1.0)
            t = jnp.where(valid, t.astype(jnp.float32), 1.0)
        focal = _focal_elementwise(p, t, alpha, gamma, binary_targets)
        # Fold the (cr, 128) strip onto the resident (8, 128) output block (VPU adds).
        out_ref[...] += focal.reshape(-1, ACC_ROWS, LANES).sum(axis=0)

    n_chunks = tile_rows // CHUNK_ROWS
    rem_rows = tile_rows % CHUNK_ROWS        # multiple of 8, since tile_rows is

    def run(masked):
        if n_chunks == 1:
            do_chunk(0, CHUNK_ROWS, masked)
        elif n_chunks > 1:
            def body(j, carry):
                off = pl.multiple_of(j * CHUNK_ROWS, CHUNK_ROWS)
                do_chunk(off, CHUNK_ROWS, masked)
                return carry
            lax.fori_loop(0, n_chunks, body, 0)
        if rem_rows:
            do_chunk(n_chunks * CHUNK_ROWS, rem_rows, masked)

    if any_masked:
        @pl.when(block_id < num_full_blocks)
        def _():
            run(masked=False)        # common fast path: no iota / compare / select

        @pl.when(block_id >= num_full_blocks)
        def _():
            run(masked=True)         # boundary block + clamped duplicate blocks
    else:
        run(masked=False)


def focal_loss(inputs, targets, alpha=0.25, gamma=2.0, reduction="mean", *,
               binary_targets=False):
    """Focal loss. `inputs` are probabilities in (0, 1); targets may be soft.

    Accepts bf16/f32 probabilities and float/int/bool targets; all casting to f32
    happens inside the kernel (no extra HBM pass in the wrapper).
    """
    assert inputs.shape == targets.shape
    n = inputs.size

    if reduction == "none":
        # TODO(synk): no dedicated elementwise-output Pallas kernel; plain jnp math.
        return _focal_elementwise(inputs, targets, float(alpha), float(gamma),
                                  binary_targets)
    if reduction not in ("mean", "sum"):
        raise ValueError(f"unknown reduction: {reduction!r}")

    max_tile_rows, num_partials, use_core_parallel, vmem_limit = _tpu_config()

    p_flat = inputs.reshape(-1)
    t_flat = targets.reshape(-1)

    rows = n // LANES
    rows_aligned = (rows // ACC_ROWS) * ACC_ROWS     # rows handled by the kernel
    kernel_n = rows_aligned * LANES

    total = jnp.zeros((), jnp.float32)

    if kernel_n > 0:
        if kernel_n == n:
            p2d = p_flat.reshape(rows_aligned, LANES)
            t2d = t_flat.reshape(rows_aligned, LANES)
        else:
            # Rare ragged case (n not a multiple of 1024): prefix view only;
            # the <1024-element tail is summed below with plain jnp.
            p2d = lax.slice(p_flat, (0,), (kernel_n,)).reshape(rows_aligned, LANES)
            t2d = lax.slice(t_flat, (0,), (kernel_n,)).reshape(rows_aligned, LANES)

        tile_rows = min(max_tile_rows, rows_aligned)           # multiple of 8
        num_row_blocks = pl.cdiv(rows_aligned, tile_rows)
        tiles_per_partial = pl.cdiv(num_row_blocks, num_partials)
        num_full_blocks = rows_aligned // tile_rows
        has_dup = (tiles_per_partial * num_partials) > num_row_blocks
        any_masked = (rows_aligned % tile_rows != 0) or has_dup

        if has_dup:
            def in_map(c, i):
                # Duplicate tail blocks of a partial re-read the last valid block;
                # their contribution is masked to zero in the kernel.
                return (jnp.minimum(c * tiles_per_partial + i, num_row_blocks - 1), 0)
        else:
            def in_map(c, i):
                return (c * tiles_per_partial + i, 0)

        kernel = functools.partial(
            _focal_loss_kernel,
            alpha=float(alpha), gamma=float(gamma), binary_targets=binary_targets,
            rows_valid=rows_aligned, tile_rows=tile_rows,
            tiles_per_partial=tiles_per_partial,
            num_full_blocks=num_full_blocks, any_masked=any_masked)

        def call(dim_sems, vmem):
            params = dict(dimension_semantics=dim_sems)
            if vmem is not None:
                params["vmem_limit_bytes"] = vmem
            return pl.pallas_call(
                kernel,
                out_shape=jax.ShapeDtypeStruct((num_partials * ACC_ROWS, LANES),
                                               jnp.float32),
                grid_spec=pltpu.PrefetchScalarGridSpec(
                    num_scalar_prefetch=0,
                    grid=(num_partials, tiles_per_partial),
                    in_specs=[pl.BlockSpec((tile_rows, LANES), in_map),
                              pl.BlockSpec((tile_rows, LANES), in_map)],
                    out_specs=pl.BlockSpec((ACC_ROWS, LANES), lambda c, i: (c, 0)),
                ),
                compiler_params=pltpu.CompilerParams(**params),
            )(p2d, t2d)

        sem0 = pltpu.CORE_PARALLEL if use_core_parallel else pltpu.ARBITRARY
        try:
            partials = call((sem0, pltpu.ARBITRARY), vmem_limit)
        except Exception:
            # TODO(synk): CORE_PARALLEL unsupported on this chip/toolchain; fall back
            # to a plain serial grid (correct, just no 2-TC sharding).
            partials = call((pltpu.ARBITRARY, pltpu.ARBITRARY), None)

        # Tiny final cross-lane reduce of <= 2 * 8 * 128 partial sums.
        total = total + jnp.sum(partials)

    if kernel_n < n:
        # <1024-element tail: plain jnp, identical math.
        p_tail = lax.slice(p_flat, (kernel_n,), (n,))
        t_tail = lax.slice(t_flat, (kernel_n,), (n,))
        total = total + jnp.sum(
            _focal_elementwise(p_tail, t_tail, float(alpha), float(gamma),
                               binary_targets))

    if reduction == "sum":
        return total
    return total / n


def focal_loss_ref(inputs, targets, alpha=0.25, gamma=2.0):
    """Pure-JAX reference matching the PyTorch module (reduction='mean')."""
    p = inputs.astype(jnp.float32)
    t = targets.astype(jnp.float32)
    bce = -(t * jnp.maximum(jnp.log(p), -100.0)
            + (1.0 - t) * jnp.maximum(jnp.log(1.0 - p), -100.0))
    p_t = p * t + (1.0 - p) * (1.0 - t)
    alpha_factor = t * alpha + (1.0 - t) * (1.0 - alpha)
    modulating = (1.0 - p_t) ** gamma
    return jnp.mean(alpha_factor * modulating * bce)


if __name__ == "__main__":
    key = jax.random.PRNGKey(0)
    k1, k2 = jax.random.split(key)
    B, C, H, W = 2, 4, 16, 16
    # Predicted probabilities in (0, 1) and binary targets, as the module expects.
    inputs = jax.nn.sigmoid(jax.random.normal(k1, (B, C, H, W), jnp.float32))
    targets = (jax.random.uniform(k2, (B, C, H, W)) > 0.5).astype(jnp.float32)

    loss = jax.block_until_ready(focal_loss(inputs, targets))
    ref = jax.block_until_ready(focal_loss_ref(inputs, targets))

    assert jnp.allclose(loss, ref, rtol=1e-5, atol=1e-6), (loss, ref)
    print("KERNEL_OK")
</pallas_src>

<mosaic_0001>
module attributes {stable_mosaic.version = 11 : i64} {
  func.func @_focal_loss_kernel(%arg0: i32, %arg1: i32, %arg2: memref<16x128xf32, #tpu.memory_space<vmem>>, %arg3: memref<16x128xf32, #tpu.memory_space<vmem>>, %arg4: memref<8x128xf32, #tpu.memory_space<vmem>>) attributes {dimension_semantics = [#tpu.dimension_semantics<arbitrary>, #tpu.dimension_semantics<arbitrary>], iteration_bounds = array<i64: 1, 1>, scalar_prefetch = 0 : i64, scratch_operands = 0 : i64, tpu.core_type = #tpu.core_type<tc>, window_params = [{transform_indices = @transform_0, window_bounds = array<i64: 16, 128>}, {transform_indices = @transform_1, window_bounds = array<i64: 16, 128>}, {transform_indices = @transform_2, window_bounds = array<i64: 8, 128>}]} {
    %c0_i32 = arith.constant 0 : i32
    %0 = arith.cmpi eq, %arg1, %c0_i32 : i32
    %1 = arith.extui %0 : i1 to i32
    %c0_i32_0 = arith.constant 0 : i32
    %2 = arith.cmpi ne, %1, %c0_i32_0 : i32
    scf.if %2 {
      %cst_19 = arith.constant 0.000000e+00 : f32
      %44 = vector.broadcast %cst_19 : f32 to vector<8x128xf32>
      %c0_20 = arith.constant 0 : index
      %c0_21 = arith.constant 0 : index
      %45 = vector.load %arg4[%c0_20, %c0_21] : memref<8x128xf32, #tpu.memory_space<vmem>>, vector<8x128xf32>
      tpu.vector_store %arg4[%c0_20, %c0_21], %44 {strides = array<i32>} : memref<8x128xf32, #tpu.memory_space<vmem>>, vector<8x128xf32>,
    } else {
    }
    %c0 = arith.constant 0 : index
    %c0_1 = arith.constant 0 : index
    %3 = vector.load %arg2[%c0, %c0_1] : memref<16x128xf32, #tpu.memory_space<vmem>>, vector<16x128xf32>
    %c0_2 = arith.constant 0 : index
    %c0_3 = arith.constant 0 : index
    %4 = vector.load %arg3[%c0_2, %c0_3] : memref<16x128xf32, #tpu.memory_space<vmem>>, vector<16x128xf32>
    %5 = arith.mulf %3, %4 : vector<16x128xf32>
    %cst = arith.constant 1.000000e+00 : f32
    %6 = vector.broadcast %cst : f32 to vector<16x128xf32>
    %7 = arith.subf %6, %3 : vector<16x128xf32>
    %cst_4 = arith.constant 1.000000e+00 : f32
    %8 = vector.broadcast %cst_4 : f32 to vector<16x128xf32>
    %9 = arith.subf %8, %4 : vector<16x128xf32>
    %10 = arith.mulf %7, %9 : vector<16x128xf32>
    %11 = arith.addf %5, %10 : vector<16x128xf32>
    %12 = math.log %3 : vector<16x128xf32>
    %cst_5 = arith.constant -1.000000e+02 : f32
    %13 = vector.broadcast %cst_5 : f32 to vector<16x128xf32>
    %14 = arith.maximumf %12, %13 : vector<16x128xf32>
    %cst_6 = arith.constant 1.000000e+00 : f32
    %15 = vector.broadcast %cst_6 : f32 to vector<16x128xf32>
    %16 = arith.subf %15, %3 : vector<16x128xf32>
    %17 = math.log %16 : vector<16x128xf32>
    %cst_7 = arith.constant -1.000000e+02 : f32
    %18 = vector.broadcast %cst_7 : f32 to vector<16x128xf32>
    %19 = arith.maximumf %17, %18 : vector<16x128xf32>
    %20 = arith.mulf %4, %14 : vector<16x128xf32>
    %cst_8 = arith.constant 1.000000e+00 : f32
    %21 = vector.broadcast %cst_8 : f32 to vector<16x128xf32>
    %22 = arith.subf %21, %4 : vector<16x128xf32>
    %23 = arith.mulf %22, %19 : vector<16x128xf32>
    %24 = arith.addf %20, %23 : vector<16x128xf32>
    %cst_9 = arith.constant 0.000000e+00 : f32
    %25 = vector.broadcast %cst_9 : f32 to vector<16x128xf32>
    %26 = arith.subf %25, %24 : vector<16x128xf32>
    %cst_10 = arith.constant 2.500000e-01 : f32
    %27 = vector.broadcast %cst_10 : f32 to vector<16x128xf32>
    %28 = arith.mulf %4, %27 : vector<16x128xf32>
    %cst_11 = arith.constant 1.000000e+00 : f32
    %29 = vector.broadcast %cst_11 : f32 to vector<16x128xf32>
    %30 = arith.subf %29, %4 : vector<16x128xf32>
    %cst_12 = arith.constant 7.500000e-01 : f32
    %31 = vector.broadcast %cst_12 : f32 to vector<16x128xf32>
    %32 = arith.mulf %30, %31 : vector<16x128xf32>
    %33 = arith.addf %28, %32 : vector<16x128xf32>
    %cst_13 = arith.constant 1.000000e+00 : f32
    %34 = vector.broadcast %cst_13 : f32 to vector<16x128xf32>
    %35 = arith.subf %34, %11 : vector<16x128xf32>
    %36 = arith.mulf %35, %35 : vector<16x128xf32>
    %37 = arith.mulf %33, %36 : vector<16x128xf32>
    %38 = arith.mulf %37, %26 : vector<16x128xf32>
    %c0_14 = arith.constant 0 : index
    %c0_15 = arith.constant 0 : index
    %39 = vector.load %arg4[%c0_14, %c0_15] : memref<8x128xf32, #tpu.memory_space<vmem>>, vector<8x128xf32>
    %40 = vector.shape_cast %38 : vector<16x128xf32> to vector<2x8x128xf32>
    %cst_16 = arith.constant dense<0.000000e+00> : vector<8x128xf32>
    %41 = vector.multi_reduction <add>, %40, %cst_16 [0] : vector<2x8x128xf32> to vector<8x128xf32>
    %42 = arith.addf %39, %41 : vector<8x128xf32>
    %c0_17 = arith.constant 0 : index
    %c0_18 = arith.constant 0 : index
    %43 = vector.load %arg4[%c0_17, %c0_18] : memref<8x128xf32, #tpu.memory_space<vmem>>, vector<8x128xf32>
    tpu.vector_store %arg4[%c0_17, %c0_18], %42 {strides = array<i32>} : memref<8x128xf32, #tpu.memory_space<vmem>>, vector<8x128xf32>,
    return
  }
  func.func @transform_0(%arg0: i32, %arg1: i32) -> (i32, i32) {
    %c1_i32 = arith.constant 1 : i32
    %0 = arith.muli %arg0, %c1_i32 : i32
    %1 = arith.addi %0, %arg1 : i32
    %c0_i32 = arith.constant 0 : i32
    %c0_i32_0 = arith.constant 0 : i32
    return %1, %c0_i32 : i32, i32
  }
  func.func @transform_1(%arg0: i32, %arg1: i32) -> (i32, i32) {
    %c1_i32 = arith.constant 1 : i32
    %0 = arith.muli %arg0, %c1_i32 : i32
    %1 = arith.addi %0, %arg1 : i32
    %c0_i32 = arith.constant 0 : i32
    %c0_i32_0 = arith.constant 0 : i32
    return %1, %c0_i32 : i32, i32
  }
  func.func @transform_2(%arg0: i32, %arg1: i32) -> (i32, i32) {
    %c0_i32 = arith.constant 0 : i32
    %c0_i32_0 = arith.constant 0 : i32
    return %arg0, %c0_i32 : i32, i32
  }
}

module attributes {stable_mosaic.version = 11 : i64} {
  func.func @_focal_loss_kernel(%arg0: i32, %arg1: i32, %arg2: memref<16x128xf32, #tpu.memory_space<vmem>>, %arg3: memref<16x128xf32, #tpu.memory_space<vmem>>, %arg4: memref<8x128xf32, #tpu.memory_space<vmem>>) attributes {dimension_semantics = [#tpu.dimension_semantics<arbitrary>, #tpu.dimension_semantics<arbitrary>], iteration_bounds = array<i64: 1, 1>, scalar_prefetch = 0 : i64, scratch_operands = 0 : i64, tpu.core_type = #tpu.core_type<tc>, window_params = [{transform_indices = @transform_0, window_bounds = array<i64: 16, 128>}, {transform_indices = @transform_1, window_bounds = array<i64: 16, 128>}, {transform_indices = @transform_2, window_bounds = array<i64: 8, 128>}]} {
    %c0_i32 = arith.constant 0 : i32
    %0 = arith.cmpi eq, %arg1, %c0_i32 : i32
    %1 = arith.extui %0 : i1 to i32
    %c0_i32_0 = arith.constant 0 : i32
    %2 = arith.cmpi ne, %1, %c0_i32_0 : i32
    scf.if %2 {
      %cst_19 = arith.constant 0.000000e+00 : f32
      %44 = vector.broadcast %cst_19 : f32 to vector<8x128xf32>
      %c0_20 = arith.constant 0 : index
      %c0_21 = arith.constant 0 : index
      %45 = vector.load %arg4[%c0_20, %c0_21] : memref<8x128xf32, #tpu.memory_space<vmem>>, vector<8x128xf32>
      tpu.vector_store %arg4[%c0_20, %c0_21], %44 {strides = array<i32>} : memref<8x128xf32, #tpu.memory_space<vmem>>, vector<8x128xf32>,
    } else {
    }
    %c0 = arith.constant 0 : index
    %c0_1 = arith.constant 0 : index
    %3 = vector.load %arg2[%c0, %c0_1] : memref<16x128xf32, #tpu.memory_space<vmem>>, vector<16x128xf32>
    %c0_2 = arith.constant 0 : index
    %c0_3 = arith.constant 0 : index
    %4 = vector.load %arg3[%c0_2, %c0_3] : memref<16x128xf32, #tpu.memory_space<vmem>>, vector<16x128xf32>
    %5 = arith.mulf %3, %4 : vector<16x128xf32>
    %cst = arith.constant 1.000000e+00 : f32
    %6 = vector.broadcast %cst : f32 to vector<16x128xf32>
    %7 = arith.subf %6, %3 : vector<16x128xf32>
    %cst_4 = arith.constant 1.000000e+00 : f32
    %8 = vector.broadcast %cst_4 : f32 to vector<16x128xf32>
    %9 = arith.subf %8, %4 : vector<16x128xf32>
    %10 = arith.mulf %7, %9 : vector<16x128xf32>
    %11 = arith.addf %5, %10 : vector<16x128xf32>
    %12 = math.log %3 : vector<16x128xf32>
    %cst_5 = arith.constant -1.000000e+02 : f32
    %13 = vector.broadcast %cst_5 : f32 to vector<16x128xf32>
    %14 = arith.maximumf %12, %13 : vector<16x128xf32>
    %cst_6 = arith.constant 1.000000e+00 : f32
    %15 = vector.broadcast %cst_6 : f32 to vector<16x128xf32>
    %16 = arith.subf %15, %3 : vector<16x128xf32>
    %17 = math.log %16 : vector<16x128xf32>
    %cst_7 = arith.constant -1.000000e+02 : f32
    %18 = vector.broadcast %cst_7 : f32 to vector<16x128xf32>
    %19 = arith.maximumf %17, %18 : vector<16x128xf32>
    %20 = arith.mulf %4, %14 : vector<16x128xf32>
    %cst_8 = arith.constant 1.000000e+00 : f32
    %21 = vector.broadcast %cst_8 : f32 to vector<16x128xf32>
    %22 = arith.subf %21, %4 : vector<16x128xf32>
    %23 = arith.mulf %22, %19 : vector<16x128xf32>
    %24 = arith.addf %20, %23 : vector<16x128xf32>
    %cst_9 = arith.constant 0.000000e+00 : f32
    %25 = vector.broadcast %cst_9 : f32 to vector<16x128xf32>
    %26 = arith.subf %25, %24 : vector<16x128xf32>
    %cst_10 = arith.constant 2.500000e-01 : f32
    %27 = vector.broadcast %cst_10 : f32 to vector<16x128xf32>
    %28 = arith.mulf %4, %27 : vector<16x128xf32>
    %cst_11 = arith.constant 1.000000e+00 : f32
    %29 = vector.broadcast %cst_11 : f32 to vector<16x128xf32>
    %30 = arith.subf %29, %4 : vector<16x128xf32>
    %cst_12 = arith.constant 7.500000e-01 : f32
    %31 = vector.broadcast %cst_12 : f32 to vector<16x128xf32>
    %32 = arith.mulf %30, %31 : vector<16x128xf32>
    %33 = arith.addf %28, %32 : vector<16x128xf32>
    %cst_13 = arith.constant 1.000000e+00 : f32
    %34 = vector.broadcast %cst_13 : f32 to vector<16x128xf32>
    %35 = arith.subf %34, %11 : vector<16x128xf32>
    %36 = arith.mulf %35, %35 : vector<16x128xf32>
    %37 = arith.mulf %33, %36 : vector<16x128xf32>
    %38 = arith.mulf %37, %26 : vector<16x128xf32>
    %c0_14 = arith.constant 0 : index
    %c0_15 = arith.constant 0 : index
    %39 = vector.load %arg4[%c0_14, %c0_15] : memref<8x128xf32, #tpu.memory_space<vmem>>, vector<8x128xf32>
    %40 = vector.shape_cast %38 : vector<16x128xf32> to vector<2x8x128xf32>
    %cst_16 = arith.constant dense<0.000000e+00> : vector<8x128xf32>
    %41 = vector.multi_reduction <add>, %40, %cst_16 [0] : vector<2x8x128xf32> to vector<8x128xf32>
    %42 = arith.addf %39, %41 : vector<8x128xf32>
    %c0_17 = arith.constant 0 : index
    %c0_18 = arith.constant 0 : index
    %43 = vector.load %arg4[%c0_17, %c0_18] : memref<8x128xf32, #tpu.memory_space<vmem>>, vector<8x128xf32>
    tpu.vector_store %arg4[%c0_17, %c0_18], %42 {strides = array<i32>} : memref<8x128xf32, #tpu.memory_space<vmem>>, vector<8x128xf32>,
    return
  }
  func.func @transform_0(%arg0: i32, %arg1: i32) -> (i32, i32) {
    %c1_i32 = arith.constant 1 : i32
    %0 = arith.muli %arg0, %c1_i32 : i32
    %1 = arith.addi %0, %arg1 : i32
    %c0_i32 = arith.constant 0 : i32
    %c0_i32_0 = arith.constant 0 : i32
    return %1, %c0_i32 : i32, i32
  }
  func.func @transform_1(%arg0: i32, %arg1: i32) -> (i32, i32) {
    %c1_i32 = arith.constant 1 : i32
    %0 = arith.muli %arg0, %c1_i32 : i32
    %1 = arith.addi %0, %arg1 : i32
    %c0_i32 = arith.constant 0 : i32
    %c0_i32_0 = arith.constant 0 : i32
    return %1, %c0_i32 : i32, i32
  }
  func.func @transform_2(%arg0: i32, %arg1: i32) -> (i32, i32) {
    %c0_i32 = arith.constant 0 : i32
    %c0_i32_0 = arith.constant 0 : i32
    return %arg0, %c0_i32 : i32, i32
  }
}

</mosaic_0001>

<llo_original>
// kernel: tpu_custom_call.1
$region0: #{tpu_custom_call.1}
  #allocation0 [shape = 'u32[]', space=smem, size = 0x4, offset = 0x4, fixed_abs, tag = 'smem constant byte address 0x4 - core index']
  #allocation1 [shape = 'u32[72,128]{1,0:T(1,128)}', space=vmem, size = 0x9000, scoped, tag = 'internal scratch']
  %s0 = inlined_call_operand.hbm [shape: f32[16,128], index: 0, kind: input, shape index: {}]
  %s1 = inlined_call_operand.hbm [shape: f32[16,128], index: 1, kind: input, shape index: {}]
  %s2 = inlined_call_operand.hbm [shape: f32[8,128], index: 2, kind: output, shape index: {}]
  %s3 = sld [smem:[#allocation0]]
  $region30: #{tpu_custom_call.1} parent=0
    _
  %s5 = ssub.s32 1, %s3
  %s6 = scalar_select 0, %s5, %s3
  $region1: #{tpu_custom_call.1} parent=0
    #allocation2 [shape = 'u8[8192]{0}', space=vmem, size = 0x2000, scoped, tag = 'input window, operand 0, single buffered']
    #allocation3 [shape = 's32[1]{0}', space=sflag, size = 0x4, scoped, tag = 'scoped memory for tpu_custom_call.1']
    #allocation4 [shape = 's32[1]{0}', space=sflag, size = 0x4, scoped, tag = 'scoped memory for tpu_custom_call.1']
    #allocation5 [shape = 'u8[8192]{0}', space=vmem, size = 0x2000, scoped, tag = 'input window, operand 1, single buffered']
    #allocation6 [shape = 's32[1]{0}', space=sflag, size = 0x4, scoped, tag = 'scoped memory for tpu_custom_call.1']
    #allocation7 [shape = 'u8[4096]{0}', space=vmem, size = 0x1000, scoped, tag = 'output window, operand 0, single buffered']
    %7 = vsyncpa [#allocation3], 0
    %8 = vsyncpa [#allocation6], 0
    %9 = vsyncpa [#allocation4], 0
    // Predicated region
    $region2: #{tpu_custom_call.1} parent=1 // pred_check
      _
    $region3: #{tpu_custom_call.1} parent=1 // pred_check_branch
      %11 = sbr.rel (0) target = $region5
    $region4: #{tpu_custom_call.1} parent=1 // pred_region
      %s12 = sadd.s32 0, 0
      %s13 = smul.u32 2, %s12
      %15 = vsyncadd [#allocation3], 0
      %s16 = smul.addr %s13, 8
      %s17 = scalar_lea.hbm %s0, %s16
      %s18 = sshll.u32 %s17, 4
      %s19 = int_to_ptr.hbm [resolvable:$true] %s18
      %s20 = sshll.u32 [#allocation2], 4
      %s21 = int_to_ptr.vmem [resolvable:$true] %s20
      %26 = dma.hbm_to_vmem [thread:$0]  %s19, 256, %s21, [#allocation3], 128, 128, 8
    $region5: #{tpu_custom_call.1} parent=1 // pred_fallthru
      _
    // Predicated region
    $region6: #{tpu_custom_call.1} parent=1 // pred_check
      _
    $region7: #{tpu_custom_call.1} parent=1 // pred_check_branch
      %28 = sbr.rel (0) target = $region9
    $region8: #{tpu_custom_call.1} parent=1 // pred_region
      %s29 = sadd.s32 0, 0
      %s30 = smul.u32 2, %s29
      %32 = vsyncadd [#allocation6], 0
      %s33 = smul.addr %s30, 8
      %s34 = scalar_lea.hbm %s1, %s33
      %s35 = sshll.u32 %s34, 4
      %s36 = int_to_ptr.hbm [resolvable:$true] %s35
      %s37 = sshll.u32 [#allocation5], 4
      %s38 = int_to_ptr.vmem [resolvable:$true] %s37
      %43 = dma.hbm_to_vmem [thread:$0]  %s36, 256, %s38, [#allocation6], 128, 128, 8
    $region9: #{tpu_custom_call.1} parent=1 // pred_fallthru
      _
    // Predicated region
    $region10: #{tpu_custom_call.1} parent=1 // pred_check
      _
    $region11: #{tpu_custom_call.1} parent=1 // pred_check_branch
      %45 = sbr.rel (0) target = $region13
    $region12: #{tpu_custom_call.1} parent=1 // pred_region
      %47 = dma.done [#allocation3], 256
    $region13: #{tpu_custom_call.1} parent=1 // pred_fallthru
      _
    // Predicated region
    $region14: #{tpu_custom_call.1} parent=1 // pred_check
      _
    $region15: #{tpu_custom_call.1} parent=1 // pred_check_branch
      %49 = sbr.rel (0) target = $region17
    $region16: #{tpu_custom_call.1} parent=1 // pred_region
      %51 = dma.done [#allocation6], 256
    $region17: #{tpu_custom_call.1} parent=1 // pred_fallthru
      _
    %s52 = sadd.s32 0, 0
    %s53 = smul.u32 2, %s52
    %s54 = sadd.s32 0, 0
    %s55 = smul.u32 2, %s54
    %p56 = scmp.eq.s32.totalorder 0, 0
    // Predicated region
    $region18: #{tpu_custom_call.1} parent=1 // pred_check
      %p57 = pneg %p56
    $region19: #{tpu_custom_call.1} parent=1 // pred_check_branch
      %59 = sbr.rel (%p57) target = $region21
    $region20: #{tpu_custom_call.1} parent=1 // pred_region
      %60 = vst [vmem:[#allocation7] sm:$0xff] 0.0
    $region21: #{tpu_custom_call.1} parent=1 // pred_fallthru
      _
    %v61 = vld [vmem:[#allocation2] sm:$0xff]
    %v62 = vld [vmem:[#allocation2 + $0x8] sm:$0xff]
    %v63 = vld [vmem:[#allocation5] sm:$0xff]
    %v64 = vld [vmem:[#allocation5 + $0x8] sm:$0xff]
    %v65 = vmul.f32 %v61, %v63
    %v66 = vmul.f32 %v62, %v64
    %v67 = vsub.f32 1.0, %v61
    %v68 = vsub.f32 1.0, %v62
    %v69 = vsub.f32 1.0, %v63
    %v70 = vsub.f32 1.0, %v64
    %v71 = vmul.f32 %v67, %v69
    %v72 = vmul.f32 %v68, %v70
    %v73 = vadd.f32 %v65, %v71
    %v74 = vadd.f32 %v66, %v72
    %v75 = vlog2.pop %v61
    %v76 = vmul.f32 %v75, 0.6931472
    %v77 = vlog2.pop %v62
    %v78 = vmul.f32 %v77, 0.6931472
    %v79 = vmax.f32 %v76, -100.0
    %v80 = vmax.f32 %v78, -100.0
    %v81 = vlog2.pop %v67
    %v82 = vmul.f32 %v81, 0.6931472
    %v83 = vlog2.pop %v68
    %v84 = vmul.f32 %v83, 0.6931472
    %v85 = vmax.f32 %v82, -100.0
    %v86 = vmax.f32 %v84, -100.0
    %v87 = vmul.f32 %v63, %v79
    %v88 = vmul.f32 %v64, %v80
    %v89 = vmul.f32 %v69, %v85
    %v90 = vmul.f32 %v70, %v86
    %v91 = vadd.f32 %v87, %v89
    %v92 = vadd.f32 %v88, %v90
    %v93 = vsub.f32 0.0, %v91
    %v94 = vsub.f32 0.0, %v92
    %v95 = vmul.f32 %v63, 0.25
    %v96 = vmul.f32 %v64, 0.25
    %v97 = vmul.f32 %v69, 0.75
    %v98 = vmul.f32 %v70, 0.75
    %v99 = vadd.f32 %v95, %v97
    %v100 = vadd.f32 %v96, %v98
    %v101 = vsub.f32 1.0, %v73
    %v102 = vsub.f32 1.0, %v74
    %v103 = vmul.f32 %v101, %v101
    %v104 = vmul.f32 %v102, %v102
    %v105 = vmul.f32 %v99, %v103
    %v106 = vmul.f32 %v100, %v104
    %v107 = vmul.f32 %v105, %v93
    %v108 = vmul.f32 %v106, %v94
    %v109 = vld [vmem:[#allocation7] sm:$0xff]
    %v110 = vadd.f32 %v107, %v108
    %v111 = vadd.f32 %v109, %v110
    %112 = vst [vmem:[#allocation7] sm:$0xff] %v111
    // Predicated region
    $region22: #{tpu_custom_call.1} parent=1 // pred_check
      _
    $region23: #{tpu_custom_call.1} parent=1 // pred_check_branch
      %114 = sbr.rel (0) target = $region25
    $region24: #{tpu_custom_call.1} parent=1 // pred_region
      %116 = vsyncadd [#allocation4], 0
      %s118 = sshll.u32 [#allocation7], 4
      %s119 = int_to_ptr.vmem [resolvable:$true] %s118
      %s120 = sshll.u32 %s2, 4
      %s121 = int_to_ptr.hbm [resolvable:$true] %s120
      %123 = dma.vmem_to_hbm [thread:$0]  %s119, 128, %s121, [#allocation4]
    $region25: #{tpu_custom_call.1} parent=1 // pred_fallthru
      _
    // Predicated region
    $region26: #{tpu_custom_call.1} parent=1 // pred_check
      _
    $region27: #{tpu_custom_call.1} parent=1 // pred_check_branch
      %125 = sbr.rel (0) target = $region29
    $region28: #{tpu_custom_call.1} parent=1 // pred_region
      %127 = dma.done [#allocation4], 128
    $region29: #{tpu_custom_call.1} parent=1 // pred_fallthru
      _
    %128 = vsyncpa [#allocation3], 1
    %129 = vsyncpa [#allocation6], 1
    %130 = vsyncpa [#allocation4], 1

// kernel: tpu_custom_call.1
$region0: #{tpu_custom_call.1}
  #allocation0 [shape = 'u32[]', space=smem, size = 0x4, offset = 0x4, fixed_abs, tag = 'smem constant byte address 0x4 - core index']
  #allocation1 [shape = 'u32[72,128]{1,0:T(1,128)}', space=vmem, size = 0x9000, scoped, tag = 'internal scratch']
  %s0 = inlined_call_operand.hbm [shape: f32[16,128], index: 0, kind: input, shape index: {}]
  %s1 = inlined_call_operand.hbm [shape: f32[16,128], index: 1, kind: input, shape index: {}]
  %s2 = inlined_call_operand.hbm [shape: f32[8,128], index: 2, kind: output, shape index: {}]
  %s3 = sld [smem:[#allocation0]]
  $region30: #{tpu_custom_call.1} parent=0
    _
  %s5 = ssub.s32 1, %s3
  %s6 = scalar_select 0, %s5, %s3
  $region1: #{tpu_custom_call.1} parent=0
    #allocation2 [shape = 'u8[8192]{0}', space=vmem, size = 0x2000, scoped, tag = 'input window, operand 0, single buffered']
    #allocation3 [shape = 's32[1]{0}', space=sflag, size = 0x4, scoped, tag = 'scoped memory for tpu_custom_call.1']
    #allocation4 [shape = 's32[1]{0}', space=sflag, size = 0x4, scoped, tag = 'scoped memory for tpu_custom_call.1']
    #allocation5 [shape = 'u8[8192]{0}', space=vmem, size = 0x2000, scoped, tag = 'input window, operand 1, single buffered']
    #allocation6 [shape = 's32[1]{0}', space=sflag, size = 0x4, scoped, tag = 'scoped memory for tpu_custom_call.1']
    #allocation7 [shape = 'u8[4096]{0}', space=vmem, size = 0x1000, scoped, tag = 'output window, operand 0, single buffered']
    %7 = vsyncpa [#allocation3], 0
    %8 = vsyncpa [#allocation6], 0
    %9 = vsyncpa [#allocation4], 0
    // Predicated region
    $region2: #{tpu_custom_call.1} parent=1 // pred_check
      _
    $region3: #{tpu_custom_call.1} parent=1 // pred_check_branch
      %11 = sbr.rel (0) target = $region5
    $region4: #{tpu_custom_call.1} parent=1 // pred_region
      %s12 = sadd.s32 0, 0
      %s13 = smul.u32 2, %s12
      %15 = vsyncadd [#allocation3], 0
      %s16 = smul.addr %s13, 8
      %s17 = scalar_lea.hbm %s0, %s16
      %s18 = sshll.u32 %s17, 4
      %s19 = int_to_ptr.hbm [resolvable:$true] %s18
      %s20 = sshll.u32 [#allocation2], 4
      %s21 = int_to_ptr.vmem [resolvable:$true] %s20
      %26 = dma.hbm_to_vmem [thread:$0]  %s19, 256, %s21, [#allocation3], 128, 128, 8
    $region5: #{tpu_custom_call.1} parent=1 // pred_fallthru
      _
    // Predicated region
    $region6: #{tpu_custom_call.1} parent=1 // pred_check
      _
    $region7: #{tpu_custom_call.1} parent=1 // pred_check_branch
      %28 = sbr.rel (0) target = $region9
    $region8: #{tpu_custom_call.1} parent=1 // pred_region
      %s29 = sadd.s32 0, 0
      %s30 = smul.u32 2, %s29
      %32 = vsyncadd [#allocation6], 0
      %s33 = smul.addr %s30, 8
      %s34 = scalar_lea.hbm %s1, %s33
      %s35 = sshll.u32 %s34, 4
      %s36 = int_to_ptr.hbm [resolvable:$true] %s35
      %s37 = sshll.u32 [#allocation5], 4
      %s38 = int_to_ptr.vmem [resolvable:$true] %s37
      %43 = dma.hbm_to_vmem [thread:$0]  %s36, 256, %s38, [#allocation6], 128, 128, 8
    $region9: #{tpu_custom_call.1} parent=1 // pred_fallthru
      _
    // Predicated region
    $region10: #{tpu_custom_call.1} parent=1 // pred_check
      _
    $region11: #{tpu_custom_call.1} parent=1 // pred_check_branch
      %45 = sbr.rel (0) target = $region13
    $region12: #{tpu_custom_call.1} parent=1 // pred_region
      %47 = dma.done [#allocation3], 256
    $region13: #{tpu_custom_call.1} parent=1 // pred_fallthru
      _
    // Predicated region
    $region14: #{tpu_custom_call.1} parent=1 // pred_check
      _
    $region15: #{tpu_custom_call.1} parent=1 // pred_check_branch
      %49 = sbr.rel (0) target = $region17
    $region16: #{tpu_custom_call.1} parent=1 // pred_region
      %51 = dma.done [#allocation6], 256
    $region17: #{tpu_custom_call.1} parent=1 // pred_fallthru
      _
    %s52 = sadd.s32 0, 0
    %s53 = smul.u32 2, %s52
    %s54 = sadd.s32 0, 0
    %s55 = smul.u32 2, %s54
    %p56 = scmp.eq.s32.totalorder 0, 0
    // Predicated region
    $region18: #{tpu_custom_call.1} parent=1 // pred_check
      %p57 = pneg %p56
    $region19: #{tpu_custom_call.1} parent=1 // pred_check_branch
      %59 = sbr.rel (%p57) target = $region21
    $region20: #{tpu_custom_call.1} parent=1 // pred_region
      %60 = vst [vmem:[#allocation7] sm:$0xff] 0.0
    $region21: #{tpu_custom_call.1} parent=1 // pred_fallthru
      _
    %v61 = vld [vmem:[#allocation2] sm:$0xff]
    %v62 = vld [vmem:[#allocation2 + $0x8] sm:$0xff]
    %v63 = vld [vmem:[#allocation5] sm:$0xff]
    %v64 = vld [vmem:[#allocation5 + $0x8] sm:$0xff]
    %v65 = vmul.f32 %v61, %v63
    %v66 = vmul.f32 %v62, %v64
    %v67 = vsub.f32 1.0, %v61
    %v68 = vsub.f32 1.0, %v62
    %v69 = vsub.f32 1.0, %v63
    %v70 = vsub.f32 1.0, %v64
    %v71 = vmul.f32 %v67, %v69
    %v72 = vmul.f32 %v68, %v70
    %v73 = vadd.f32 %v65, %v71
    %v74 = vadd.f32 %v66, %v72
    %v75 = vlog2.pop %v61
    %v76 = vmul.f32 %v75, 0.6931472
    %v77 = vlog2.pop %v62
    %v78 = vmul.f32 %v77, 0.6931472
    %v79 = vmax.f32 %v76, -100.0
    %v80 = vmax.f32 %v78, -100.0
    %v81 = vlog2.pop %v67
    %v82 = vmul.f32 %v81, 0.6931472
    %v83 = vlog2.pop %v68
    %v84 = vmul.f32 %v83, 0.6931472
    %v85 = vmax.f32 %v82, -100.0
    %v86 = vmax.f32 %v84, -100.0
    %v87 = vmul.f32 %v63, %v79
    %v88 = vmul.f32 %v64, %v80
    %v89 = vmul.f32 %v69, %v85
    %v90 = vmul.f32 %v70, %v86
    %v91 = vadd.f32 %v87, %v89
    %v92 = vadd.f32 %v88, %v90
    %v93 = vsub.f32 0.0, %v91
    %v94 = vsub.f32 0.0, %v92
    %v95 = vmul.f32 %v63, 0.25
    %v96 = vmul.f32 %v64, 0.25
    %v97 = vmul.f32 %v69, 0.75
    %v98 = vmul.f32 %v70, 0.75
    %v99 = vadd.f32 %v95, %v97
    %v100 = vadd.f32 %v96, %v98
    %v101 = vsub.f32 1.0, %v73
    %v102 = vsub.f32 1.0, %v74
    %v103 = vmul.f32 %v101, %v101
    %v104 = vmul.f32 %v102, %v102
    %v105 = vmul.f32 %v99, %v103
    %v106 = vmul.f32 %v100, %v104
    %v107 = vmul.f32 %v105, %v93
    %v108 = vmul.f32 %v106, %v94
    %v109 = vld [vmem:[#allocation7] sm:$0xff]
    %v110 = vadd.f32 %v107, %v108
    %v111 = vadd.f32 %v109, %v110
    %112 = vst [vmem:[#allocation7] sm:$0xff] %v111
    // Predicated region
    $region22: #{tpu_custom_call.1} parent=1 // pred_check
      _
    $region23: #{tpu_custom_call.1} parent=1 // pred_check_branch
      %114 = sbr.rel (0) target = $region25
    $region24: #{tpu_custom_call.1} parent=1 // pred_region
      %116 = vsyncadd [#allocation4], 0
      %s118 = sshll.u32 [#allocation7], 4
      %s119 = int_to_ptr.vmem [resolvable:$true] %s118
      %s120 = sshll.u32 %s2, 4
      %s121 = int_to_ptr.hbm [resolvable:$true] %s120
      %123 = dma.vmem_to_hbm [thread:$0]  %s119, 128, %s121, [#allocation4]
    $region25: #{tpu_custom_call.1} parent=1 // pred_fallthru
      _
    // Predicated region
    $region26: #{tpu_custom_call.1} parent=1 // pred_check
      _
    $region27: #{tpu_custom_call.1} parent=1 // pred_check_branch
      %125 = sbr.rel (0) target = $region29
    $region28: #{tpu_custom_call.1} parent=1 // pred_region
      %127 = dma.done [#allocation4], 128
    $region29: #{tpu_custom_call.1} parent=1 // pred_fallthru
      _
    %128 = vsyncpa [#allocation3], 1
    %129 = vsyncpa [#allocation6], 1
    %130 = vsyncpa [#allocation4], 1

</llo_original>
